<compile_context>
chip_gen: v6e
topology: v6e:2x2x1
jax: 0.10.0
libtpu: 0.0.40
codegen_flags: <defaults>
</compile_context>

<pallas_src>
import functools

import jax
import jax.numpy as jnp
from jax.experimental import pallas as pl
from jax.experimental.pallas import tpu as pltpu

_LANES = 128
_TARGET_BLOCK_BYTES = 4 * 1024 * 1024   # ~4 MiB of HBM per input per grid step
_NCORES_MAX = 2                         # leading "parallel" axis (2 TCs on v7x)
_MIB = 1024 * 1024


def _vmem_capacity_bytes():
    """Physical per-core VMEM; conservative fallback is the v7x value (64 MiB)."""
    try:
        info = pltpu.get_tpu_info()
        return int(getattr(info, "vmem_capacity_bytes", 64 * _MIB))
    except Exception:
        return 64 * _MIB


def _rmse_kernel(yt_ref, yp_ref, part_ref, acc_ref, *,
                 rows_valid, tile_rows, t_total, mask_needed):
    c = pl.program_id(0)        # core split (parallel)
    i = pl.program_id(1)        # row-tile index within this core (reduction)
    n_i = pl.num_programs(1)

    @pl.when(i == 0)
    def _():
        acc_ref[...] = jnp.zeros_like(acc_ref)

    # Logical (unclamped) tile index. The index_map clamps the DMA so it never
    # walks past the array; the mask below uses the *unclamped* index so
    # clamped duplicate tiles contribute exactly zero.
    tile_idx = c * n_i + i

    def accumulate(apply_mask):
        yt = yt_ref[...]
        yp = yp_ref[...]
        if yt.dtype == yp.dtype and yt.dtype == jnp.bfloat16:
            # bf16 subtract stays packed on the v6e/v7x VALU; accumulate in f32.
            d = (yt - yp).astype(jnp.float32)
        else:
            d = yt.astype(jnp.float32) - yp.astype(jnp.float32)
        if apply_mask:
            row0 = tile_idx * tile_rows
            local = jax.lax.broadcasted_iota(jnp.int32, (tile_rows, _LANES), 0)
            # Mask BEFORE squaring so OOB garbage (possibly NaN) becomes 0.
            d = jnp.where((row0 + local) < rows_valid, d, jnp.float32(0.0))
        sq = d * d
        if tile_rows % 8 == 0:
            # Per-step partial reduce into a single-vreg accumulator: the
            # reshape preserves (8,128) tiles, the leading-axis reduce is pure
            # vreg-to-vreg VPU adds -> no full-tile accumulator read/write.
            acc_ref[...] += jnp.sum(sq.reshape(-1, 8, _LANES), axis=0)
        else:
            # Tiny-array case (rows < 8): (1,128) accumulator.
            acc_ref[...] += jnp.sum(sq, axis=0, keepdims=True)

    if mask_needed:
        # Only the last logical tile (possibly partial) and clamped duplicates
        # ever need the mask; keep iota/compare/select off the hot path.
        edge = tile_idx >= (t_total - 1)

        @pl.when(jnp.logical_not(edge))
        def _():
            accumulate(False)

        @pl.when(edge)
        def _():
            accumulate(True)
    else:
        accumulate(False)

    @pl.when(i == n_i - 1)
    def _():
        # Single cross-sublane collapse per core -> (1, 128) partial sums.
        part_ref[...] = jnp.sum(acc_ref[...], axis=0, keepdims=True)


def rmse_loss(y_true, y_pred, eps=1e-6):
    assert y_true.shape == y_pred.shape
    n_elems = y_true.size

    # Keep native dtypes (no silent downcast of predictions); the kernel
    # upcasts both operands to f32 on the VPU.
    yt = jnp.ravel(y_true)
    yp = jnp.ravel(y_pred)

    # Lane alignment without a full-array pad copy: the kernel streams the
    # 128-aligned prefix (free reshape); the <=127-element tail is summed here.
    rem = n_elems % _LANES
    main = n_elems - rem
    tail_sse = jnp.float32(0.0)
    if rem:
        dt = yt[main:].astype(jnp.float32) - yp[main:].astype(jnp.float32)
        tail_sse = jnp.sum(dt * dt)

    if main == 0:
        sse = tail_sse
    else:
        yt_m = yt[:main] if rem else yt
        yp_m = yp[:main] if rem else yp
        rows = main // _LANES
        yt_m = yt_m.reshape(rows, _LANES)
        yp_m = yp_m.reshape(rows, _LANES)

        # Dtype-aware block rows: ~4 MiB per input per step (8192 f32 /
        # 16384 bf16 rows); full-dim block for small inputs (always legal).
        itemsize = max(jnp.dtype(yt_m.dtype).itemsize,
                       jnp.dtype(yp_m.dtype).itemsize)
        tile_rows = max(8, _TARGET_BLOCK_BYTES // (_LANES * itemsize))
        if rows <= tile_rows:
            tile_rows = rows

        t_total = pl.cdiv(rows, tile_rows)            # total row tiles
        ncores = _NCORES_MAX if t_total >= 2 else 1   # collapse for tiny inputs
        tiles_per_core = pl.cdiv(t_total, ncores)
        mask_needed = (rows % tile_rows != 0) or (ncores * tiles_per_core != t_total)
        acc_rows = 8 if tile_rows % 8 == 0 else 1

        # VMEM: 2 inputs x 2 buffers x 4 MiB = 16 MiB + elementwise temporaries.
        # Raise the scoped limit (v5e default is only 16 MiB) but stay well
        # under physical VMEM on every generation (64 MiB on v7x cores).
        vmem_limit = min(_vmem_capacity_bytes() - 16 * _MIB, 64 * _MIB)
        vmem_limit = int(max(vmem_limit, 32 * _MIB))

        def in_map(c, i):
            # Clamp so the DMA never walks past the array; overflow duplicate
            # tiles are masked to zero inside the kernel.
            t = jnp.minimum(c * tiles_per_core + i, t_total - 1)
            return (t, 0)

        kernel = functools.partial(
            _rmse_kernel, rows_valid=rows, tile_rows=tile_rows,
            t_total=t_total, mask_needed=mask_needed)

        partials = pl.pallas_call(
            kernel,
            out_shape=jax.ShapeDtypeStruct((ncores, _LANES), jnp.float32),
            grid_spec=pltpu.PrefetchScalarGridSpec(
                num_scalar_prefetch=0,
                grid=(ncores, tiles_per_core),
                in_specs=[
                    pl.BlockSpec((tile_rows, _LANES), in_map),
                    pl.BlockSpec((tile_rows, _LANES), in_map),
                ],
                out_specs=pl.BlockSpec((1, _LANES), lambda c, i: (c, 0)),
                scratch_shapes=[pltpu.VMEM((acc_rows, _LANES), jnp.float32)],
            ),
            compiler_params=pltpu.CompilerParams(
                dimension_semantics=("parallel", "arbitrary"),
                vmem_limit_bytes=vmem_limit,
            ),
        )(yt_m, yp_m)

        sse = jnp.sum(partials) + tail_sse

    # Tiny finalize: mean over the true element count, add eps, sqrt.
    return jnp.sqrt(sse / jnp.float32(n_elems) + jnp.float32(eps))


if __name__ == "__main__":
    key = jax.random.PRNGKey(0)
    k1, k2 = jax.random.split(key)
    # Small NCHW-style regression target.
    y_true = jax.random.normal(k1, (2, 4, 16, 16), dtype=jnp.float32)
    y_pred = jax.random.normal(k2, (2, 4, 16, 16), dtype=jnp.float32)

    loss = rmse_loss(y_true, y_pred)
    jax.block_until_ready(loss)

    # Reference check (plain JAX).
    ref = jnp.sqrt(jnp.mean((y_true - y_pred) ** 2) + 1e-6)
    assert jnp.allclose(loss, ref, rtol=1e-5, atol=1e-6), (loss, ref)

    print("KERNEL_OK")
</pallas_src>

<mosaic_0001>
module attributes {stable_mosaic.version = 11 : i64} {
  func.func @_rmse_kernel(%arg0: i32, %arg1: i32, %arg2: memref<16x128xf32, #tpu.memory_space<vmem>>, %arg3: memref<16x128xf32, #tpu.memory_space<vmem>>, %arg4: memref<1x128xf32, #tpu.memory_space<vmem>>, %arg5: memref<8x128xf32, #tpu.memory_space<vmem>>) attributes {dimension_semantics = [#tpu.dimension_semantics<parallel>, #tpu.dimension_semantics<arbitrary>], iteration_bounds = array<i64: 1, 1>, scalar_prefetch = 0 : i64, scratch_operands = 1 : i64, tpu.core_type = #tpu.core_type<tc>, window_params = [{transform_indices = @transform_0, window_bounds = array<i64: 16, 128>}, {transform_indices = @transform_1, window_bounds = array<i64: 16, 128>}, {transform_indices = @transform_2, window_bounds = array<i64: 1, 128>}]} {
    %c0_i32 = arith.constant 0 : i32
    %0 = arith.cmpi eq, %arg1, %c0_i32 : i32
    %1 = arith.extui %0 : i1 to i32
    %c0_i32_0 = arith.constant 0 : i32
    %2 = arith.cmpi ne, %1, %c0_i32_0 : i32
    scf.if %2 {
      %cst_10 = arith.constant 0.000000e+00 : f32
      %15 = vector.broadcast %cst_10 : f32 to vector<8x128xf32>
      %c0_11 = arith.constant 0 : index
      %c0_12 = arith.constant 0 : index
      %16 = vector.load %arg5[%c0_11, %c0_12] : memref<8x128xf32, #tpu.memory_space<vmem>>, vector<8x128xf32>
      tpu.vector_store %arg5[%c0_11, %c0_12], %15 {strides = array<i32>} : memref<8x128xf32, #tpu.memory_space<vmem>>, vector<8x128xf32>,
    } else {
    }
    %c0 = arith.constant 0 : index
    %c0_1 = arith.constant 0 : index
    %3 = vector.load %arg2[%c0, %c0_1] : memref<16x128xf32, #tpu.memory_space<vmem>>, vector<16x128xf32>
    %c0_2 = arith.constant 0 : index
    %c0_3 = arith.constant 0 : index
    %4 = vector.load %arg3[%c0_2, %c0_3] : memref<16x128xf32, #tpu.memory_space<vmem>>, vector<16x128xf32>
    %5 = arith.subf %3, %4 : vector<16x128xf32>
    %6 = arith.mulf %5, %5 : vector<16x128xf32>
    %c0_4 = arith.constant 0 : index
    %c0_5 = arith.constant 0 : index
    %7 = vector.load %arg5[%c0_4, %c0_5] : memref<8x128xf32, #tpu.memory_space<vmem>>, vector<8x128xf32>
    %8 = vector.shape_cast %6 : vector<16x128xf32> to vector<2x8x128xf32>
    %cst = arith.constant dense<0.000000e+00> : vector<8x128xf32>
    %9 = vector.multi_reduction <add>, %8, %cst [0] : vector<2x8x128xf32> to vector<8x128xf32>
    %10 = arith.addf %7, %9 : vector<8x128xf32>
    %c0_6 = arith.constant 0 : index
    %c0_7 = arith.constant 0 : index
    %11 = vector.load %arg5[%c0_6, %c0_7] : memref<8x128xf32, #tpu.memory_space<vmem>>, vector<8x128xf32>
    tpu.vector_store %arg5[%c0_6, %c0_7], %10 {strides = array<i32>} : memref<8x128xf32, #tpu.memory_space<vmem>>, vector<8x128xf32>,
    %c0_i32_8 = arith.constant 0 : i32
    %12 = arith.cmpi eq, %arg1, %c0_i32_8 : i32
    %13 = arith.extui %12 : i1 to i32
    %c0_i32_9 = arith.constant 0 : i32
    %14 = arith.cmpi ne, %13, %c0_i32_9 : i32
    scf.if %14 {
      %c0_10 = arith.constant 0 : index
      %c0_11 = arith.constant 0 : index
      %15 = vector.load %arg5[%c0_10, %c0_11] : memref<8x128xf32, #tpu.memory_space<vmem>>, vector<8x128xf32>
      %cst_12 = arith.constant dense<0.000000e+00> : vector<128xf32>
      %16 = vector.multi_reduction <add>, %15, %cst_12 [0] : vector<8x128xf32> to vector<128xf32>
      %17 = vector.shape_cast %16 : vector<128xf32> to vector<1x128xf32>
      %c0_13 = arith.constant 0 : index
      %c0_14 = arith.constant 0 : index
      %18 = vector.load %arg4[%c0_13, %c0_14] : memref<1x128xf32, #tpu.memory_space<vmem>>, vector<1x128xf32>
      tpu.vector_store %arg4[%c0_13, %c0_14], %17 {strides = array<i32>} : memref<1x128xf32, #tpu.memory_space<vmem>>, vector<1x128xf32>,
    } else {
    }
    return
  }
  func.func @transform_0(%arg0: i32, %arg1: i32) -> (i32, i32) {
    %c1_i32 = arith.constant 1 : i32
    %0 = arith.muli %arg0, %c1_i32 : i32
    %1 = arith.addi %0, %arg1 : i32
    %c0_i32 = arith.constant 0 : i32
    %2 = arith.minsi %1, %c0_i32 : i32
    %c0_i32_0 = arith.constant 0 : i32
    %c0_i32_1 = arith.constant 0 : i32
    return %2, %c0_i32_0 : i32, i32
  }
  func.func @transform_1(%arg0: i32, %arg1: i32) -> (i32, i32) {
    %c1_i32 = arith.constant 1 : i32
    %0 = arith.muli %arg0, %c1_i32 : i32
    %1 = arith.addi %0, %arg1 : i32
    %c0_i32 = arith.constant 0 : i32
    %2 = arith.minsi %1, %c0_i32 : i32
    %c0_i32_0 = arith.constant 0 : i32
    %c0_i32_1 = arith.constant 0 : i32
    return %2, %c0_i32_0 : i32, i32
  }
  func.func @transform_2(%arg0: i32, %arg1: i32) -> (i32, i32) {
    %c0_i32 = arith.constant 0 : i32
    %c0_i32_0 = arith.constant 0 : i32
    return %arg0, %c0_i32 : i32, i32
  }
}

</mosaic_0001>

<llo_original>
// kernel: tpu_custom_call.1
$region0: #{tpu_custom_call.1}
  #allocation0 [shape = 'u32[]', space=smem, size = 0x4, offset = 0x4, fixed_abs, tag = 'smem constant byte address 0x4 - core index']
  #allocation1 [shape = 'u32[144,128]{1,0:T(1,128)}', space=vmem, size = 0x12000, scoped, tag = 'internal scratch']
  #allocation2 [shape = 'f32[8,128]{1,0:T(8,128)}', space=vmem, size = 0x1000, scoped, tag = 'scratch operand']
  %s0 = inlined_call_operand.hbm [shape: f32[16,128], index: 0, kind: input, shape index: {}]
  %s1 = inlined_call_operand.hbm [shape: f32[16,128], index: 1, kind: input, shape index: {}]
  %s2 = inlined_call_operand.hbm [shape: f32[1,128], index: 2, kind: output, shape index: {}]
  %s3 = sld [smem:[#allocation0]]
  $region34: #{tpu_custom_call.1} parent=0
    _
  %s5 = ssub.s32 1, %s3
  %s6 = scalar_select 0, %s5, %s3
  $region1: #{tpu_custom_call.1} parent=0
    #allocation3 [shape = 'u8[8192]{0}', space=vmem, size = 0x2000, scoped, tag = 'input window, operand 0, single buffered']
    #allocation4 [shape = 's32[1]{0}', space=sflag, size = 0x4, scoped, tag = 'scoped memory for tpu_custom_call.1']
    #allocation5 [shape = 's32[1]{0}', space=sflag, size = 0x4, scoped, tag = 'scoped memory for tpu_custom_call.1']
    #allocation6 [shape = 'u8[8192]{0}', space=vmem, size = 0x2000, scoped, tag = 'input window, operand 1, single buffered']
    #allocation7 [shape = 's32[1]{0}', space=sflag, size = 0x4, scoped, tag = 'scoped memory for tpu_custom_call.1']
    #allocation8 [shape = 'u8[512]{0}', space=vmem, size = 0x400, scoped, tag = 'output window, operand 0, single buffered']
    %7 = vsyncpa [#allocation4], 0
    %8 = vsyncpa [#allocation7], 0
    %9 = vsyncpa [#allocation5], 0
    // Predicated region
    $region2: #{tpu_custom_call.1} parent=1 // pred_check
      _
    $region3: #{tpu_custom_call.1} parent=1 // pred_check_branch
      %11 = sbr.rel (0) target = $region5
    $region4: #{tpu_custom_call.1} parent=1 // pred_region
      %s12 = sadd.s32 0, 0
      %p13 = scmp.lt.s32.totalorder %s12, 0
      %s14 = scalar_select %p13, %s12, 0
      %s15 = smul.u32 2, %s14
      %s17 = ssub.s32 256, 256
      %18 = vsyncadd [#allocation4], %s17
      %s19 = smul.addr %s15, 128
      %s20 = scalar_lea.hbm %s0, %s19
      %s21 = sshll.u32 [#allocation3], 4
      %s22 = int_to_ptr.vmem [resolvable:$true] %s21
      %27 = dma.hbm_to_vmem [thread:$0]  %s20, 256, %s22, [#allocation4], 128, 128, 8
    $region5: #{tpu_custom_call.1} parent=1 // pred_fallthru
      _
    // Predicated region
    $region6: #{tpu_custom_call.1} parent=1 // pred_check
      _
    $region7: #{tpu_custom_call.1} parent=1 // pred_check_branch
      %29 = sbr.rel (0) target = $region9
    $region8: #{tpu_custom_call.1} parent=1 // pred_region
      %s30 = sadd.s32 0, 0
      %p31 = scmp.lt.s32.totalorder %s30, 0
      %s32 = scalar_select %p31, %s30, 0
      %s33 = smul.u32 2, %s32
      %s35 = ssub.s32 256, 256
      %36 = vsyncadd [#allocation7], %s35
      %s37 = smul.addr %s33, 128
      %s38 = scalar_lea.hbm %s1, %s37
      %s39 = sshll.u32 [#allocation6], 4
      %s40 = int_to_ptr.vmem [resolvable:$true] %s39
      %45 = dma.hbm_to_vmem [thread:$0]  %s38, 256, %s40, [#allocation7], 128, 128, 8
    $region9: #{tpu_custom_call.1} parent=1 // pred_fallthru
      _
    // Predicated region
    $region10: #{tpu_custom_call.1} parent=1 // pred_check
      _
    $region11: #{tpu_custom_call.1} parent=1 // pred_check_branch
      %47 = sbr.rel (0) target = $region13
    $region12: #{tpu_custom_call.1} parent=1 // pred_region
      %48 = dma.done [#allocation4], 256
    $region13: #{tpu_custom_call.1} parent=1 // pred_fallthru
      _
    // Predicated region
    $region14: #{tpu_custom_call.1} parent=1 // pred_check
      _
    $region15: #{tpu_custom_call.1} parent=1 // pred_check_branch
      %50 = sbr.rel (0) target = $region17
    $region16: #{tpu_custom_call.1} parent=1 // pred_region
      %51 = dma.done [#allocation7], 256
    $region17: #{tpu_custom_call.1} parent=1 // pred_fallthru
      _
    %s52 = sadd.s32 0, 0
    %p53 = scmp.lt.s32.totalorder %s52, 0
    %s54 = scalar_select %p53, %s52, 0
    %s55 = smul.u32 2, %s54
    %s56 = sadd.s32 0, 0
    %p57 = scmp.lt.s32.totalorder %s56, 0
    %s58 = scalar_select %p57, %s56, 0
    %s59 = smul.u32 2, %s58
    %p60 = scmp.eq.s32.totalorder 0, 0
    // Predicated region
    $region18: #{tpu_custom_call.1} parent=1 // pred_check
      %p61 = pneg %p60
    $region19: #{tpu_custom_call.1} parent=1 // pred_check_branch
      %63 = sbr.rel (%p61) target = $region21
    $region20: #{tpu_custom_call.1} parent=1 // pred_region
      %64 = vst [vmem:[#allocation2] sm:$0xff] 0.0
    $region21: #{tpu_custom_call.1} parent=1 // pred_fallthru
      _
    %v65 = vld [vmem:[#allocation3] sm:$0xff]
    %v66 = vld [vmem:[#allocation3 + $0x8] sm:$0xff]
    %v67 = vld [vmem:[#allocation6] sm:$0xff]
    %v68 = vld [vmem:[#allocation6 + $0x8] sm:$0xff]
    %v69 = vsub.f32 %v65, %v67
    %v70 = vsub.f32 %v66, %v68
    %v71 = vmul.f32 %v69, %v69
    %v72 = vmul.f32 %v70, %v70
    %v73 = vld [vmem:[#allocation2] sm:$0xff]
    %v74 = vadd.f32 %v71, %v72
    %v75 = vadd.f32 %v73, %v74
    %76 = vst [vmem:[#allocation2] sm:$0xff] %v75
    // Predicated region
    $region22: #{tpu_custom_call.1} parent=1 // pred_check
      %p77 = pneg %p60
    $region23: #{tpu_custom_call.1} parent=1 // pred_check_branch
      %79 = sbr.rel (%p77) target = $region25
    $region24: #{tpu_custom_call.1} parent=1 // pred_region
      %v80 = vld [vmem:[#allocation2] sm:$0xff]
      %v81 = vrot.slane %v80, 4
      %v82 = vadd.f32 %v80, %v81
      %v83 = vrot.slane %v82, 2
      %v84 = vadd.f32 %v82, %v83
      %v85 = vrot.slane %v84, 1
      %v86 = vadd.f32 %v84, %v85
      %87 = vst [vmem:[#allocation8] sm:$0x1] %v86
    $region25: #{tpu_custom_call.1} parent=1 // pred_fallthru
      _
    // Predicated region
    $region26: #{tpu_custom_call.1} parent=1 // pred_check
      _
    $region27: #{tpu_custom_call.1} parent=1 // pred_check_branch
      %89 = sbr.rel (0) target = $region29
    $region28: #{tpu_custom_call.1} parent=1 // pred_region
      %s91 = ssub.s32 16, 16
      %92 = vsyncadd [#allocation5], %s91
      %s94 = sshll.u32 [#allocation8], 4
      %s95 = int_to_ptr.vmem [resolvable:$true] %s94
      %97 = dma.vmem_to_hbm [thread:$0]  %s95, 16, %s2, [#allocation5]
    $region29: #{tpu_custom_call.1} parent=1 // pred_fallthru
      _
    // Predicated region
    $region30: #{tpu_custom_call.1} parent=1 // pred_check
      _
    $region31: #{tpu_custom_call.1} parent=1 // pred_check_branch
      %99 = sbr.rel (0) target = $region33
    $region32: #{tpu_custom_call.1} parent=1 // pred_region
      %100 = dma.done [#allocation5], 16
    $region33: #{tpu_custom_call.1} parent=1 // pred_fallthru
      _
    %101 = vsyncpa [#allocation4], 1
    %102 = vsyncpa [#allocation7], 1
    %103 = vsyncpa [#allocation5], 1

</llo_original>
